<compile_context>
chip_gen: v5e
topology: v5e:2x2
jax: 0.10.0
libtpu: 0.0.40
codegen_flags: <defaults>
</compile_context>

<pallas_src>
import functools

import jax
import jax.numpy as jnp
from jax import lax
from jax.experimental import pallas as pl
from jax.experimental.pallas import tpu as pltpu


def _leaky(x, slope):
    return jnp.where(x >= 0, x, slope * x)


# ----------------------------------------------------------------------------
# Kernel: one (batch, head, row-tile) step of a GraphAttentionLayer.
# ----------------------------------------------------------------------------
def _gat_layer_kernel(x_ref, adj_ref, w_ref, a1_ref, a2_ref, b_ref, out_ref,
                      h_ref, grow_ref, *, alpha, out_slope, row_block):
    r = pl.program_id(2)

    # Per-(batch, head) prologue: project node features once, keep them in a
    # VMEM scratch and reuse them for every query-row tile of this (b, head).
    @pl.when(r == 0)
    def _():
        # h = x @ W^T : contract the feature axis of both operands directly so
        # no transposed copy of W is ever materialized.
        h_ref[...] = lax.dot_general(
            x_ref[0], w_ref[0],
            dimension_numbers=(((1,), (1,)), ((), ())),
            preferred_element_type=jnp.float32)
        # g[j] = h[j] . a2, laid out as a (1, N) row for cheap lane broadcast.
        grow_ref[...] = lax.dot_general(
            a2_ref[0], h_ref[...],
            dimension_numbers=(((1,), (1,)), ((), ())),
            preferred_element_type=jnp.float32)

    h = h_ref[...]                                        # (N, out_c)
    row0 = pl.multiple_of(r * row_block, row_block)
    h_rows = h_ref[pl.ds(row0, row_block), :]             # (tr, out_c)

    # f[i] = h[i] . a1  -> (tr, 1)
    f = lax.dot_general(h_rows, a1_ref[0],
                        dimension_numbers=(((1,), (1,)), ((), ())),
                        preferred_element_type=jnp.float32)

    # e[i, j] = LeakyReLU(f[i] + g[j], alpha), masked by the graph.
    e = _leaky(f + grow_ref[...], alpha)                  # (tr, N)
    scores = e * adj_ref[...]
    # torch: outputs.masked_fill_(outputs == 0, -1e16)  (finite fill -> no NaN)
    scores = jnp.where(scores == 0.0, jnp.float32(-1e16), scores)

    # Row softmax with deferred normalization (normalize after attn @ h).
    m = jnp.max(scores, axis=-1, keepdims=True)
    p = jnp.exp(scores - m)
    denom = jnp.sum(p, axis=-1, keepdims=True)            # (tr, 1)

    out = jnp.dot(p, h, preferred_element_type=jnp.float32)       # (tr, out_c)
    # pl.reciprocal(denom, approx=True) is an essentially free EUP op; exact
    # form kept so results match the pure-JAX reference tightly.
    out = out * pl.reciprocal(denom) + b_ref[0]
    if out_slope is not None:
        out = _leaky(out, out_slope)                      # fused GATSubNet.act
    out_ref[0, 0] = out.astype(out_ref.dtype)


def _pick_row_block(n, target=128):
    if n <= target:
        return n
    for tr in (256, 128, 64, 32, 16, 8):
        if tr <= target and n % tr == 0:
            return tr
    return n


# ----------------------------------------------------------------------------
# Wrapper: one multi-head GraphAttentionLayer (heads concatenated on features).
# ----------------------------------------------------------------------------
def gat_layer(x, graph, W, a, b, *, alpha, out_slope=None, row_block=None):
    """x: (B, N, in_c), graph: (N, N), W: (H, out_c, in_c), a: (H, 2*out_c),
    b: (H, out_c).  Returns (B, N, H*out_c)."""
    B, N, in_c = x.shape
    n_heads, out_c, in_c_w = W.shape
    assert in_c_w == in_c and graph.shape == (N, N)

    a1 = a[:, :out_c].reshape(n_heads, 1, out_c).astype(jnp.float32)
    a2 = a[:, out_c:].reshape(n_heads, 1, out_c).astype(jnp.float32)
    bias = b.reshape(n_heads, 1, out_c).astype(jnp.float32)

    tr = row_block or _pick_row_block(N)
    assert N % tr == 0, (N, tr)
    grid = (B, n_heads, N // tr)

    kernel = functools.partial(
        _gat_layer_kernel, alpha=float(alpha),
        out_slope=None if out_slope is None else float(out_slope),
        row_block=tr)

    out = pl.pallas_call(
        kernel,
        out_shape=jax.ShapeDtypeStruct((B, n_heads, N, out_c), jnp.float32),
        grid=grid,
        in_specs=[
            pl.BlockSpec((1, N, in_c), lambda bb, hd, r: (bb, 0, 0)),    # x
            pl.BlockSpec((tr, N), lambda bb, hd, r: (r, 0)),             # graph
            pl.BlockSpec((1, out_c, in_c), lambda bb, hd, r: (hd, 0, 0)),# W
            pl.BlockSpec((1, 1, out_c), lambda bb, hd, r: (hd, 0, 0)),   # a1
            pl.BlockSpec((1, 1, out_c), lambda bb, hd, r: (hd, 0, 0)),   # a2
            pl.BlockSpec((1, 1, out_c), lambda bb, hd, r: (hd, 0, 0)),   # b
        ],
        out_specs=pl.BlockSpec((1, 1, tr, out_c),
                               lambda bb, hd, r: (bb, hd, r, 0)),
        scratch_shapes=[
            pltpu.VMEM((N, out_c), jnp.float32),   # projected features h
            pltpu.VMEM((1, N), jnp.float32),       # key-side logits g
        ],
        compiler_params=pltpu.CompilerParams(
            dimension_semantics=("parallel", "parallel", "arbitrary"),
            vmem_limit_bytes=32 * 1024 * 1024),
    )(x.astype(jnp.float32), graph.astype(jnp.float32),
      W.astype(jnp.float32), a1, a2, bias)

    # torch.cat([head_0, ..., head_{H-1}], dim=-1)
    return jnp.transpose(out, (0, 2, 1, 3)).reshape(B, N, n_heads * out_c)


def gat_subnet(x, graph, params, alpha):
    # Multi-head layer (+ fused LeakyReLU(0.01)), then output layer (+ LeakyReLU).
    hidden = gat_layer(x, graph, params["W1"], params["a1"], params["b1"],
                       alpha=alpha, out_slope=0.01)
    return gat_layer(hidden, graph, params["W2"], params["a2"], params["b2"],
                     alpha=alpha, out_slope=0.01)


def gat_net(flow, graph, params, alpha):
    assert graph.shape[0] == flow.shape[1], "Dimension mismatch!"
    pred = gat_subnet(flow, graph, params, alpha)
    if pred.shape[2] == 1:          # torch .squeeze(2)
        pred = pred[:, :, 0]
    return pred


# ----------------------------------------------------------------------------
# Pure-JAX reference mirroring the PyTorch module exactly.
# ----------------------------------------------------------------------------
def _gat_layer_ref(x, graph, W, a, b, alpha):
    n_heads, out_c, _ = W.shape
    outs = []
    for hd in range(n_heads):
        h = jnp.einsum("bnt,ot->bno", x, W[hd])
        f = h @ a[hd, :out_c]
        g = h @ a[hd, out_c:]
        e = _leaky(f[:, :, None] + g[:, None, :], alpha)
        s = e * graph[None]
        s = jnp.where(s == 0.0, jnp.float32(-1e16), s)
        attn = jax.nn.softmax(s, axis=2)
        outs.append(jnp.einsum("bij,bjo->bio", attn, h) + b[hd])
    return jnp.concatenate(outs, axis=-1)


def _gat_net_ref(flow, graph, params, alpha):
    h1 = _leaky(_gat_layer_ref(flow, graph, params["W1"], params["a1"],
                               params["b1"], alpha), 0.01)
    out = _leaky(_gat_layer_ref(h1, graph, params["W2"], params["a2"],
                                params["b2"], alpha), 0.01)
    if out.shape[2] == 1:
        out = out[:, :, 0]
    return out


if __name__ == "__main__":
    B, N, T = 2, 16, 8                  # batch, nodes, input time-steps
    hid_c, out_c, n_heads = 32, 16, 4   # hidden per head, output dim, heads
    alpha = 0.2

    key = jax.random.PRNGKey(0)
    ks = jax.random.split(key, 8)
    flow = jax.random.normal(ks[0], (B, N, T), dtype=jnp.float32)
    adj = (jax.random.uniform(ks[1], (N, N)) < 0.4).astype(jnp.float32)
    graph = jnp.minimum(adj + jnp.eye(N, dtype=jnp.float32), 1.0)

    params = {
        "W1": jax.random.normal(ks[2], (n_heads, hid_c, T), dtype=jnp.float32),
        "a1": jax.random.normal(ks[3], (n_heads, 2 * hid_c), dtype=jnp.float32),
        "b1": jax.random.normal(ks[4], (n_heads, hid_c), dtype=jnp.float32),
        "W2": jax.random.normal(ks[5], (1, out_c, n_heads * hid_c),
                                dtype=jnp.float32),
        "a2": jax.random.normal(ks[6], (1, 2 * out_c), dtype=jnp.float32),
        "b2": jax.random.normal(ks[7], (1, out_c), dtype=jnp.float32),
    }

    pred = gat_net(flow, graph, params, alpha)
    jax.block_until_ready(pred)

    ref = _gat_net_ref(flow, graph, params, alpha)
    assert pred.shape == ref.shape == (B, N, out_c), (pred.shape, ref.shape)
    max_err = float(jnp.max(jnp.abs(pred - ref)))
    scale = float(jnp.max(jnp.abs(ref))) + 1.0
    assert max_err <= 1e-3 * scale, (max_err, scale)

    print("KERNEL_OK")
</pallas_src>

<mosaic_0001>
module attributes {stable_mosaic.version = 11 : i64} {
  func.func @_gat_layer_kernel(%arg0: i32, %arg1: i32, %arg2: i32, %arg3: memref<1x16x8xf32, #tpu.memory_space<vmem>>, %arg4: memref<16x16xf32, #tpu.memory_space<vmem>>, %arg5: memref<1x32x8xf32, #tpu.memory_space<vmem>>, %arg6: memref<1x1x32xf32, #tpu.memory_space<vmem>>, %arg7: memref<1x1x32xf32, #tpu.memory_space<vmem>>, %arg8: memref<1x1x32xf32, #tpu.memory_space<vmem>>, %arg9: memref<1x1x16x32xf32, #tpu.memory_space<vmem>>, %arg10: memref<16x32xf32, #tpu.memory_space<vmem>>, %arg11: memref<1x16xf32, #tpu.memory_space<vmem>>) attributes {dimension_semantics = [#tpu.dimension_semantics<parallel>, #tpu.dimension_semantics<parallel>, #tpu.dimension_semantics<arbitrary>], iteration_bounds = array<i64: 2, 4, 1>, scalar_prefetch = 0 : i64, scratch_operands = 2 : i64, tpu.core_type = #tpu.core_type<tc>, window_params = [{transform_indices = @transform_0, window_bounds = array<i64: 1, 16, 8>}, {transform_indices = @transform_1, window_bounds = array<i64: 16, 16>}, {transform_indices = @transform_2, window_bounds = array<i64: 1, 32, 8>}, {transform_indices = @transform_3, window_bounds = array<i64: 1, 1, 32>}, {transform_indices = @transform_4, window_bounds = array<i64: 1, 1, 32>}, {transform_indices = @transform_5, window_bounds = array<i64: 1, 1, 32>}, {transform_indices = @transform_6, window_bounds = array<i64: 1, 1, 16, 32>}]} {
    %c0_i32 = arith.constant 0 : i32
    %0 = arith.cmpi eq, %arg2, %c0_i32 : i32
    %1 = arith.extui %0 : i1 to i32
    %c0_i32_0 = arith.constant 0 : i32
    %2 = arith.cmpi ne, %1, %c0_i32_0 : i32
    scf.if %2 {
      %c0_26 = arith.constant 0 : index
      %c0_27 = arith.constant 0 : index
      %c0_28 = arith.constant 0 : index
      %49 = vector.load %arg3[%c0_26, %c0_27, %c0_28] : memref<1x16x8xf32, #tpu.memory_space<vmem>>, vector<1x16x8xf32>
      %50 = vector.shape_cast %49 : vector<1x16x8xf32> to vector<16x8xf32>
      %c0_29 = arith.constant 0 : index
      %c0_30 = arith.constant 0 : index
      %c0_31 = arith.constant 0 : index
      %51 = vector.load %arg5[%c0_29, %c0_30, %c0_31] : memref<1x32x8xf32, #tpu.memory_space<vmem>>, vector<1x32x8xf32>
      %52 = vector.shape_cast %51 : vector<1x32x8xf32> to vector<32x8xf32>
      %cst_32 = arith.constant dense<0.000000e+00> : vector<16x32xf32>
      %53 = tpu.matmul %50, %52, %cst_32 {dimension_numbers = #tpu.dot_dimension_numbers<[1], [1], [0], [0], [0, 0, 1, 0], [], []>} : vector<16x8xf32>, vector<32x8xf32>, vector<16x32xf32> -> vector<16x32xf32>
      %c0_33 = arith.constant 0 : index
      %c0_34 = arith.constant 0 : index
      %54 = vector.load %arg10[%c0_33, %c0_34] : memref<16x32xf32, #tpu.memory_space<vmem>>, vector<16x32xf32>
      tpu.vector_store %arg10[%c0_33, %c0_34], %53 {strides = array<i32>} : memref<16x32xf32, #tpu.memory_space<vmem>>, vector<16x32xf32>,
      %c0_35 = arith.constant 0 : index
      %c0_36 = arith.constant 0 : index
      %c0_37 = arith.constant 0 : index
      %55 = vector.load %arg7[%c0_35, %c0_36, %c0_37] : memref<1x1x32xf32, #tpu.memory_space<vmem>>, vector<1x1x32xf32>
      %56 = vector.shape_cast %55 : vector<1x1x32xf32> to vector<1x32xf32>
      %c0_38 = arith.constant 0 : index
      %c0_39 = arith.constant 0 : index
      %57 = vector.load %arg10[%c0_38, %c0_39] : memref<16x32xf32, #tpu.memory_space<vmem>>, vector<16x32xf32>
      %cst_40 = arith.constant dense<0.000000e+00> : vector<1x16xf32>
      %58 = tpu.matmul %56, %57, %cst_40 {dimension_numbers = #tpu.dot_dimension_numbers<[1], [1], [0], [0], [0, 0, 1, 0], [], []>} : vector<1x32xf32>, vector<16x32xf32>, vector<1x16xf32> -> vector<1x16xf32>
      %c0_41 = arith.constant 0 : index
      %c0_42 = arith.constant 0 : index
      %59 = vector.load %arg11[%c0_41, %c0_42] : memref<1x16xf32, #tpu.memory_space<vmem>>, vector<1x16xf32>
      tpu.vector_store %arg11[%c0_41, %c0_42], %58 {strides = array<i32>} : memref<1x16xf32, #tpu.memory_space<vmem>>, vector<1x16xf32>,
    } else {
    }
    %c0 = arith.constant 0 : index
    %c0_1 = arith.constant 0 : index
    %3 = vector.load %arg10[%c0, %c0_1] : memref<16x32xf32, #tpu.memory_space<vmem>>, vector<16x32xf32>
    %c16_i32 = arith.constant 16 : i32
    %4 = arith.muli %arg2, %c16_i32 : i32
    %5 = tpu.assume_multiple %4, 16 : i32
    %6 = arith.index_cast %5 : i32 to index
    %c0_2 = arith.constant 0 : index
    %7 = vector.load %arg10[%6, %c0_2] : memref<16x32xf32, #tpu.memory_space<vmem>>, vector<16x32xf32>
    %c0_3 = arith.constant 0 : index
    %c0_4 = arith.constant 0 : index
    %c0_5 = arith.constant 0 : index
    %8 = vector.load %arg6[%c0_3, %c0_4, %c0_5] : memref<1x1x32xf32, #tpu.memory_space<vmem>>, vector<1x1x32xf32>
    %9 = vector.shape_cast %8 : vector<1x1x32xf32> to vector<1x32xf32>
    %cst = arith.constant dense<0.000000e+00> : vector<16x1xf32>
    %10 = tpu.matmul %7, %9, %cst {dimension_numbers = #tpu.dot_dimension_numbers<[1], [1], [0], [0], [0, 0, 1, 0], [], []>} : vector<16x32xf32>, vector<1x32xf32>, vector<16x1xf32> -> vector<16x1xf32>
    %c0_6 = arith.constant 0 : index
    %c0_7 = arith.constant 0 : index
    %11 = vector.load %arg11[%c0_6, %c0_7] : memref<1x16xf32, #tpu.memory_space<vmem>>, vector<1x16xf32>
    %12 = vector.broadcast %10 : vector<16x1xf32> to vector<16x16xf32>
    %13 = vector.broadcast %11 : vector<1x16xf32> to vector<16x16xf32>
    %14 = arith.addf %12, %13 : vector<16x16xf32>
    %cst_8 = arith.constant 0.000000e+00 : f32
    %15 = vector.broadcast %cst_8 : f32 to vector<16x16xf32>
    %16 = arith.cmpf oge, %14, %15 : vector<16x16xf32>
    %cst_9 = arith.constant 2.000000e-01 : f32
    %17 = vector.broadcast %cst_9 : f32 to vector<16x16xf32>
    %18 = arith.mulf %17, %14 : vector<16x16xf32>
    %19 = arith.select %16, %14, %18 : vector<16x16xi1>, vector<16x16xf32>
    %c0_10 = arith.constant 0 : index
    %c0_11 = arith.constant 0 : index
    %20 = vector.load %arg4[%c0_10, %c0_11] : memref<16x16xf32, #tpu.memory_space<vmem>>, vector<16x16xf32>
    %21 = arith.mulf %19, %20 : vector<16x16xf32>
    %cst_12 = arith.constant 0.000000e+00 : f32
    %22 = vector.broadcast %cst_12 : f32 to vector<16x16xf32>
    %23 = arith.cmpf oeq, %21, %22 : vector<16x16xf32>
    %cst_13 = arith.constant -1.000000e+16 : f32
    %24 = vector.broadcast %cst_13 : f32 to vector<16x16xf32>
    %25 = arith.select %23, %24, %21 : vector<16x16xi1>, vector<16x16xf32>
    %cst_14 = arith.constant dense<0xFF800000> : vector<16xf32>
    %26 = vector.multi_reduction <maximumf>, %25, %cst_14 [1] : vector<16x16xf32> to vector<16xf32>
    %27 = vector.shape_cast %26 : vector<16xf32> to vector<16x1xf32>
    %28 = vector.broadcast %27 : vector<16x1xf32> to vector<16x16xf32>
    %29 = arith.subf %25, %28 : vector<16x16xf32>
    %30 = math.exp %29 : vector<16x16xf32>
    %cst_15 = arith.constant dense<0.000000e+00> : vector<16xf32>
    %31 = vector.multi_reduction <add>, %30, %cst_15 [1] : vector<16x16xf32> to vector<16xf32>
    %32 = vector.shape_cast %31 : vector<16xf32> to vector<16x1xf32>
    %cst_16 = arith.constant dense<0.000000e+00> : vector<16x32xf32>
    %33 = tpu.matmul %30, %3, %cst_16 {dimension_numbers = #tpu.dot_dimension_numbers<[1], [0], [0], [1], [0, 0, 1, 1], [], []>} : vector<16x16xf32>, vector<16x32xf32>, vector<16x32xf32> -> vector<16x32xf32>
    %34 = tpu.reciprocal %32 : vector<16x1xf32> -> vector<16x1xf32>
    %35 = vector.broadcast %34 : vector<16x1xf32> to vector<16x32xf32>
    %36 = arith.mulf %33, %35 : vector<16x32xf32>
    %c0_17 = arith.constant 0 : index
    %c0_18 = arith.constant 0 : index
    %c0_19 = arith.constant 0 : index
    %37 = vector.load %arg8[%c0_17, %c0_18, %c0_19] : memref<1x1x32xf32, #tpu.memory_space<vmem>>, vector<1x1x32xf32>
    %38 = vector.shape_cast %37 : vector<1x1x32xf32> to vector<1x32xf32>
    %39 = vector.broadcast %38 : vector<1x32xf32> to vector<16x32xf32>
    %40 = arith.addf %36, %39 : vector<16x32xf32>
    %cst_20 = arith.constant 0.000000e+00 : f32
    %41 = vector.broadcast %cst_20 : f32 to vector<16x32xf32>
    %42 = arith.cmpf oge, %40, %41 : vector<16x32xf32>
    %cst_21 = arith.constant 0.00999999977 : f32
    %43 = vector.broadcast %cst_21 : f32 to vector<16x32xf32>
    %44 = arith.mulf %43, %40 : vector<16x32xf32>
    %45 = arith.select %42, %40, %44 : vector<16x32xi1>, vector<16x32xf32>
    %c0_22 = arith.constant 0 : index
    %c0_23 = arith.constant 0 : index
    %c0_24 = arith.constant 0 : index
    %c0_25 = arith.constant 0 : index
    %46 = vector.load %arg9[%c0_22, %c0_23, %c0_24, %c0_25] : memref<1x1x16x32xf32, #tpu.memory_space<vmem>>, vector<1x1x16x32xf32>
    %47 = vector.shape_cast %46 : vector<1x1x16x32xf32> to vector<16x32xf32>
    %48 = vector.shape_cast %45 : vector<16x32xf32> to vector<1x1x16x32xf32>
    tpu.vector_store %arg9[%c0_22, %c0_23, %c0_24, %c0_25], %48 {strides = array<i32>} : memref<1x1x16x32xf32, #tpu.memory_space<vmem>>, vector<1x1x16x32xf32>,
    return
  }
  func.func @transform_0(%arg0: i32, %arg1: i32, %arg2: i32) -> (i32, i32, i32) {
    %c0_i32 = arith.constant 0 : i32
    %c0_i32_0 = arith.constant 0 : i32
    %c0_i32_1 = arith.constant 0 : i32
    return %arg0, %c0_i32, %c0_i32_0 : i32, i32, i32
  }
  func.func @transform_1(%arg0: i32, %arg1: i32, %arg2: i32) -> (i32, i32) {
    %c0_i32 = arith.constant 0 : i32
    %c0_i32_0 = arith.constant 0 : i32
    return %arg2, %c0_i32 : i32, i32
  }
  func.func @transform_2(%arg0: i32, %arg1: i32, %arg2: i32) -> (i32, i32, i32) {
    %c0_i32 = arith.constant 0 : i32
    %c0_i32_0 = arith.constant 0 : i32
    %c0_i32_1 = arith.constant 0 : i32
    return %arg1, %c0_i32, %c0_i32_0 : i32, i32, i32
  }
  func.func @transform_3(%arg0: i32, %arg1: i32, %arg2: i32) -> (i32, i32, i32) {
    %c0_i32 = arith.constant 0 : i32
    %c0_i32_0 = arith.constant 0 : i32
    %c0_i32_1 = arith.constant 0 : i32
    return %arg1, %c0_i32, %c0_i32_0 : i32, i32, i32
  }
  func.func @transform_4(%arg0: i32, %arg1: i32, %arg2: i32) -> (i32, i32, i32) {
    %c0_i32 = arith.constant 0 : i32
    %c0_i32_0 = arith.constant 0 : i32
    %c0_i32_1 = arith.constant 0 : i32
    return %arg1, %c0_i32, %c0_i32_0 : i32, i32, i32
  }
  func.func @transform_5(%arg0: i32, %arg1: i32, %arg2: i32) -> (i32, i32, i32) {
    %c0_i32 = arith.constant 0 : i32
    %c0_i32_0 = arith.constant 0 : i32
    %c0_i32_1 = arith.constant 0 : i32
    return %arg1, %c0_i32, %c0_i32_0 : i32, i32, i32
  }
  func.func @transform_6(%arg0: i32, %arg1: i32, %arg2: i32) -> (i32, i32, i32, i32) {
    %c0_i32 = arith.constant 0 : i32
    %c0_i32_0 = arith.constant 0 : i32
    return %arg0, %arg1, %arg2, %c0_i32 : i32, i32, i32, i32
  }
}

</mosaic_0001>

<llo_original>
// kernel: tpu_custom_call.1
$region0: #{tpu_custom_call.1}
  #allocation0 [shape = 'u32[]', space=smem, size = 0x4, offset = 0x4, fixed_abs, tag = 'smem constant byte address 0x4 - core index']
  #allocation1 [shape = 'u32[72,128]{1,0:T(1,128)}', space=vmem, size = 0x9000, scoped, tag = 'internal scratch']
  #allocation2 [shape = 'f32[16,32]{1,0:T(8,128)}', space=vmem, size = 0x2000, scoped, tag = 'scratch operand']
  #allocation3 [shape = 'f32[1,16]{1,0:T(1,128)}', space=vmem, size = 0x200, scoped, tag = 'scratch operand']
  %s0 = inlined_call_operand.vmem [shape: f32[2,16,8], index: 0, kind: input, shape index: {}]
  %s1 = inlined_call_operand.vmem [shape: f32[16,16], index: 1, kind: input, shape index: {}]
  %s2 = inlined_call_operand.vmem [shape: f32[4,32,8], index: 2, kind: input, shape index: {}]
  %s3 = inlined_call_operand.vmem [shape: f32[4,1,32], index: 3, kind: input, shape index: {}]
  %s4 = inlined_call_operand.vmem [shape: f32[4,1,32], index: 4, kind: input, shape index: {}]
  %s5 = inlined_call_operand.vmem [shape: f32[4,1,32], index: 5, kind: input, shape index: {}]
  %s6 = inlined_call_operand.hbm [shape: f32[2,4,16,32], index: 6, kind: output, shape index: {}]
  %s7 = sld [smem:[#allocation0]]
  $region61: #{tpu_custom_call.1} parent=0
    _
  %s9 = ssub.s32 1, %s7
  %s10 = scalar_select 0, %s9, %s7
  $region1: #{tpu_custom_call.1} parent=0
    #allocation4 [shape = 'u8[16384]{0}', space=vmem, size = 0x4000, scoped, tag = 'output window, operand 0']
    #allocation5 [shape = 's32[2]{0}', space=sflag, size = 0x8, scoped, tag = 'scoped memory for tpu_custom_call.1']
    %11 = vsyncpa [#allocation5], 0
    %s12 = scalar_lea.sflag [#allocation5], 1
    %13 = vsyncpa %s12, 0
    loop: start=0, step=1, limit=10
    $region2: #{tpu_custom_call.1} parent=1 // loop_pre_header
      _
    $region3: #{tpu_custom_call.1} parent=1 // loop_header
      %s15 = sphi 0, %s19
      %p16 = scmp.ge.s32.totalorder %s15, 10
      %s22 = sphi 0, %s41
      %s23 = sphi 0, %s37
      %s24 = sphi 0, %s33
      %s25 = sphi 0, %s22
      %s26 = sphi 0, %s23
      %s27 = sphi 0, %s24
      %s28 = sphi 0, %s25
      %s29 = sphi 0, %s26
      %s30 = sphi 0, %s27
      %s44 = sphi 0, %s46
      %s47 = sphi 0, %s44
      %s48 = sphi 0, %s47
      %s64 = sphi 0, %s48
      %s70 = sphi 0, %s72
      %s73 = sphi 0, %s70
      %s74 = sphi 0, %s73
      %s90 = sphi 0, %s74
      %s96 = sphi 0, %s98
      %s99 = sphi 0, %s96
      %s100 = sphi 0, %s99
      %s116 = sphi 0, %s100
      %s122 = sphi 0, %s124
      %s125 = sphi 0, %s122
      %s126 = sphi 0, %s125
      %s142 = sphi 0, %s126
      %s148 = sphi 0, %s150
      %s151 = sphi 0, %s148
      %s152 = sphi 0, %s151
      %s168 = sphi 0, %s152
      %s174 = sphi 0, %s176
      %s177 = sphi 0, %s174
      %s178 = sphi 0, %s177
      %s194 = sphi 0, %s178
      %s204 = sphi 0, %s206
      %s207 = sphi 0, %s204
      %s208 = sphi 0, %s207
      %s224 = sphi 0, %s208
    $region4: #{tpu_custom_call.1} parent=1 // loop_header_branch
      %18 = sbr.rel (%p16) target = $region8
    $region5: #{tpu_custom_call.1} parent=1 // loop_body
      %s20 = ssub.s32 %s15, 1
      %s21 = ssub.s32 %s15, 2
      %s31 = sadd.s32 1, %s24
      %p32 = scmp.ge.s32.totalorder %s31, 1
      %s33 = scalar_select %p32, 0, %s31
      %s34 = sadd.s32 1, %s23
      %s35 = scalar_select %p32, %s34, %s23
      %p36 = scmp.ge.s32.totalorder %s35, 4
      %s37 = scalar_select %p36, 0, %s35
      %s38 = sadd.s32 1, %s22
      %s39 = scalar_select %p36, %s38, %s22
      %p40 = scmp.ge.s32.totalorder %s39, 2
      %s41 = scalar_select %p40, 0, %s39
      %s42 = ssub.s32 %s22, %s41
      %p43 = scmp.eq.s32.totalorder %s42, 0
      %s45 = sadd.s32 %s44, 1
      %s46 = scalar_select %p43, %s44, %s45
      %p49 = pneg %p43
      %p50 = scmp.eq.s32.totalorder %s15, 7
      %p51 = por %p49, %p50
      %p52 = scmp.ne.s32.totalorder %s44, %s47
      %p53 = scmp.eq.s32.totalorder %s15, 0
      %p54 = por %p52, %p53
      %p55 = scmp.ne.s32.totalorder %s44, %s47
      %p56 = scmp.eq.s32.totalorder %s20, 7
      %p57 = por %p55, %p56
      %p58 = scmp.ne.s32.totalorder %s47, %s48
      %p59 = scmp.eq.s32.totalorder %s20, 0
      %p60 = por %p58, %p59
      %p61 = scmp.ne.s32.totalorder %s47, %s48
      %p62 = scmp.eq.s32.totalorder %s21, 7
      %p63 = por %p61, %p62
      %p65 = scmp.ne.s32.totalorder %s48, %s64
      %p66 = scmp.eq.s32.totalorder %s21, 0
      %p67 = por %p65, %p66
      %s68 = ssub.s32 %s24, %s33
      %p69 = scmp.eq.s32.totalorder %s68, 0
      %s71 = sadd.s32 %s70, 1
      %s72 = scalar_select %p69, %s70, %s71
      %p75 = pneg %p69
      %p76 = scmp.eq.s32.totalorder %s15, 7
      %p77 = por %p75, %p76
      %p78 = scmp.ne.s32.totalorder %s70, %s73
      %p79 = scmp.eq.s32.totalorder %s15, 0
      %p80 = por %p78, %p79
      %p81 = scmp.ne.s32.totalorder %s70, %s73
      %p82 = scmp.eq.s32.totalorder %s20, 7
      %p83 = por %p81, %p82
      %p84 = scmp.ne.s32.totalorder %s73, %s74
      %p85 = scmp.eq.s32.totalorder %s20, 0
      %p86 = por %p84, %p85
      %p87 = scmp.ne.s32.totalorder %s73, %s74
      %p88 = scmp.eq.s32.totalorder %s21, 7
      %p89 = por %p87, %p88
      %p91 = scmp.ne.s32.totalorder %s74, %s90
      %p92 = scmp.eq.s32.totalorder %s21, 0
      %p93 = por %p91, %p92
      %s94 = ssub.s32 %s23, %s37
      %p95 = scmp.eq.s32.totalorder %s94, 0
      %s97 = sadd.s32 %s96, 1
      %s98 = scalar_select %p95, %s96, %s97
      %p101 = pneg %p95
      %p102 = scmp.eq.s32.totalorder %s15, 7
      %p103 = por %p101, %p102
      %p104 = scmp.ne.s32.totalorder %s96, %s99
      %p105 = scmp.eq.s32.totalorder %s15, 0
      %p106 = por %p104, %p105
      %p107 = scmp.ne.s32.totalorder %s96, %s99
      %p108 = scmp.eq.s32.totalorder %s20, 7
      %p109 = por %p107, %p108
      %p110 = scmp.ne.s32.totalorder %s99, %s100
      %p111 = scmp.eq.s32.totalorder %s20, 0
      %p112 = por %p110, %p111
      %p113 = scmp.ne.s32.totalorder %s99, %s100
      %p114 = scmp.eq.s32.totalorder %s21, 7
      %p115 = por %p113, %p114
      %p117 = scmp.ne.s32.totalorder %s100, %s116
      %p118 = scmp.eq.s32.totalorder %s21, 0
      %p119 = por %p117, %p118
      %s120 = ssub.s32 %s23, %s37
      %p121 = scmp.eq.s32.totalorder %s120, 0
      %s123 = sadd.s32 %s122, 1
      %s124 = scalar_select %p121, %s122, %s123
      %p127 = pneg %p121
      %p128 = scmp.eq.s32.totalorder %s15, 7
      %p129 = por %p127, %p128
      %p130 = scmp.ne.s32.totalorder %s122, %s125
      %p131 = scmp.eq.s32.totalorder %s15, 0
      %p132 = por %p130, %p131
      %p133 = scmp.ne.s32.totalorder %s122, %s125
      %p134 = scmp.eq.s32.totalorder %s20, 7
      %p135 = por %p133, %p134
      %p136 = scmp.ne.s32.totalorder %s125, %s126
      %p137 = scmp.eq.s32.totalorder %s20, 0
      %p138 = por %p136, %p137
      %p139 = scmp.ne.s32.totalorder %s125, %s126
      %p140 = scmp.eq.s32.totalorder %s21, 7
      %p141 = por %p139, %p140
      %p143 = scmp.ne.s32.totalorder %s126, %s142
      %p144 = scmp.eq.s32.totalorder %s21, 0
      %p145 = por %p143, %p144
      %s146 = ssub.s32 %s23, %s37
      %p147 = scmp.eq.s32.totalorder %s146, 0
      %s149 = sadd.s32 %s148, 1
      %s150 = scalar_select %p147, %s148, %s149
      %p153 = pneg %p147
      %p154 = scmp.eq.s32.totalorder %s15, 7
      %p155 = por %p153, %p154
      %p156 = scmp.ne.s32.totalorder %s148, %s151
      %p157 = scmp.eq.s32.totalorder %s15, 0
      %p158 = por %p156, %p157
      %p159 = scmp.ne.s32.totalorder %s148, %s151
      %p160 = scmp.eq.s32.totalorder %s20, 7
      %p161 = por %p159, %p160
      %p162 = scmp.ne.s32.totalorder %s151, %s152
      %p163 = scmp.eq.s32.totalorder %s20, 0
      %p164 = por %p162, %p163
      %p165 = scmp.ne.s32.totalorder %s151, %s152
      %p166 = scmp.eq.s32.totalorder %s21, 7
      %p167 = por %p165, %p166
      %p169 = scmp.ne.s32.totalorder %s152, %s168
      %p170 = scmp.eq.s32.totalorder %s21, 0
      %p171 = por %p169, %p170
      %s172 = ssub.s32 %s23, %s37
      %p173 = scmp.eq.s32.totalorder %s172, 0
      %s175 = sadd.s32 %s174, 1
      %s176 = scalar_select %p173, %s174, %s175
      %p179 = pneg %p173
      %p180 = scmp.eq.s32.totalorder %s15, 7
      %p181 = por %p179, %p180
      %p182 = scmp.ne.s32.totalorder %s174, %s177
      %p183 = scmp.eq.s32.totalorder %s15, 0
      %p184 = por %p182, %p183
      %p185 = scmp.ne.s32.totalorder %s174, %s177
      %p186 = scmp.eq.s32.totalorder %s20, 7
      %p187 = por %p185, %p186
      %p188 = scmp.ne.s32.totalorder %s177, %s178
      %p189 = scmp.eq.s32.totalorder %s20, 0
      %p190 = por %p188, %p189
      %p191 = scmp.ne.s32.totalorder %s177, %s178
      %p192 = scmp.eq.s32.totalorder %s21, 7
      %p193 = por %p191, %p192
      %p195 = scmp.ne.s32.totalorder %s178, %s194
      %p196 = scmp.eq.s32.totalorder %s21, 0
      %p197 = por %p195, %p196
      %s198 = ssub.s32 %s22, %s41
      %s199 = ssub.s32 %s23, %s37
      %s200 = sor.u32 %s198, %s199
      %s201 = ssub.s32 %s24, %s33
      %s202 = sor.u32 %s200, %s201
      %p203 = scmp.eq.s32.totalorder %s202, 0
      %s205 = sadd.s32 %s204, 1
      %s206 = scalar_select %p203, %s204, %s205
      %p209 = pneg %p203
      %p210 = scmp.eq.s32.totalorder %s15, 7
      %p211 = por %p209, %p210
      %p212 = scmp.ne.s32.totalorder %s204, %s207
      %p213 = scmp.eq.s32.totalorder %s15, 0
      %p214 = por %p212, %p213
      %p215 = scmp.ne.s32.totalorder %s204, %s207
      %p216 = scmp.eq.s32.totalorder %s20, 7
      %p217 = por %p215, %p216
      %p218 = scmp.ne.s32.totalorder %s207, %s208
      %p219 = scmp.eq.s32.totalorder %s20, 0
      %p220 = por %p218, %p219
      %p221 = scmp.ne.s32.totalorder %s207, %s208
      %p222 = scmp.eq.s32.totalorder %s21, 7
      %p223 = por %p221, %p222
      %p225 = scmp.ne.s32.totalorder %s208, %s224
      %p226 = scmp.eq.s32.totalorder %s21, 0
      %p227 = por %p225, %p226
      %p228 = scmp.le.s32.totalorder 1, %s15
      %p229 = scmp.lt.s32.totalorder %s15, 9
      %p230 = pnand %p228, %p229
      %p231 = pneg %p230
      // Predicated region
      $region9: #{tpu_custom_call.1} parent=5 // pred_check
        _
      $region10: #{tpu_custom_call.1} parent=5 // pred_check_branch
        %233 = sbr.rel (%p230) target = $region12
      $region11: #{tpu_custom_call.1} parent=5 // pred_region
        %s234 = ssub.s32 %s15, 1
        // Predicated region
        $region13: #{tpu_custom_call.1} parent=11 // pred_check
          %p235 = pneg %p86
        $region14: #{tpu_custom_call.1} parent=11 // pred_check_branch
          %237 = sbr.rel (%p235) target = $region16
        $region15: #{tpu_custom_call.1} parent=11 // pred_region
          %s238 = smul.u32 2, %s27
          %p239 = scmp.lt.s32.totalorder %s238, 1
          %s240 = scalar_select %p239, %s238, 1
          %s241 = smul.addr %s240, 8
          %s242 = scalar_lea.vmem %s1, %s241
          %s243 = smul.u32 2, %s27
        $region16: #{tpu_custom_call.1} parent=11 // pred_fallthru
          _
      $region12: #{tpu_custom_call.1} parent=5 // pred_fallthru
        _
      %p244 = scmp.lt.s32.totalorder %s15, 8
      // Predicated region
      $region17: #{tpu_custom_call.1} parent=5 // pred_check
        %p245 = pneg %p244
      $region18: #{tpu_custom_call.1} parent=5 // pred_check_branch
        %247 = sbr.rel (%p245) target = $region20
      $region19: #{tpu_custom_call.1} parent=5 // pred_region
        // Predicated region
        $region21: #{tpu_custom_call.1} parent=19 // pred_check
          %p248 = pneg %p54
        $region22: #{tpu_custom_call.1} parent=19 // pred_check_branch
          %250 = sbr.rel (%p248) target = $region24
        $region23: #{tpu_custom_call.1} parent=19 // pred_region
          %p251 = scmp.lt.s32.totalorder %s22, 1
          %s252 = scalar_select %p251, %s22, 1
          %s253 = smul.addr %s252, 2
          %s254 = smul.addr %s253, 8
          %s255 = scalar_lea.vmem %s0, %s254
        $region24: #{tpu_custom_call.1} parent=19 // pred_fallthru
          _
        // Predicated region
        $region25: #{tpu_custom_call.1} parent=19 // pred_check
          %p256 = pneg %p106
        $region26: #{tpu_custom_call.1} parent=19 // pred_check_branch
          %258 = sbr.rel (%p256) target = $region28
        $region27: #{tpu_custom_call.1} parent=19 // pred_region
          %p259 = scmp.lt.s32.totalorder %s23, 3
          %s260 = scalar_select %p259, %s23, 3
          %s261 = smul.addr %s260, 4
          %s262 = smul.addr %s261, 8
          %s263 = scalar_lea.vmem %s2, %s262
        $region28: #{tpu_custom_call.1} parent=19 // pred_fallthru
          _
        // Predicated region
        $region29: #{tpu_custom_call.1} parent=19 // pred_check
          %p264 = pneg %p132
        $region30: #{tpu_custom_call.1} parent=19 // pred_check_branch
          %266 = sbr.rel (%p264) target = $region32
        $region31: #{tpu_custom_call.1} parent=19 // pred_region
          %p267 = scmp.lt.s32.totalorder %s23, 3
          %s268 = scalar_select %p267, %s23, 3
          %s269 = scalar_lea.vmem %s3, %s268
        $region32: #{tpu_custom_call.1} parent=19 // pred_fallthru
          _
        // Predicated region
        $region33: #{tpu_custom_call.1} parent=19 // pred_check
          %p270 = pneg %p158
        $region34: #{tpu_custom_call.1} parent=19 // pred_check_branch
          %272 = sbr.rel (%p270) target = $region36
        $region35: #{tpu_custom_call.1} parent=19 // pred_region
          %p273 = scmp.lt.s32.totalorder %s23, 3
          %s274 = scalar_select %p273, %s23, 3
          %s275 = scalar_lea.vmem %s4, %s274
        $region36: #{tpu_custom_call.1} parent=19 // pred_fallthru
          _
        // Predicated region
        $region37: #{tpu_custom_call.1} parent=19 // pred_check
          %p276 = pneg %p184
        $region38: #{tpu_custom_call.1} parent=19 // pred_check_branch
          %278 = sbr.rel (%p276) target = $region40
        $region39: #{tpu_custom_call.1} parent=19 // pred_region
          %p279 = scmp.lt.s32.totalorder %s23, 3
          %s280 = scalar_select %p279, %s23, 3
          %s281 = scalar_lea.vmem %s5, %s280
        $region40: #{tpu_custom_call.1} parent=19 // pred_fallthru
          _
      $region20: #{tpu_custom_call.1} parent=5 // pred_fallthru
        _
      %p282 = scmp.le.s32.totalorder 1, %s15
      %p283 = scmp.lt.s32.totalorder %s15, 9
      %p284 = pnand %p282, %p283
      %p285 = pneg %p284
      // Predicated region
      $region41: #{tpu_custom_call.1} parent=5 // pred_check
        _
      $region42: #{tpu_custom_call.1} parent=5 // pred_check_branch
        %287 = sbr.rel (%p284) target = $region44
      $region43: #{tpu_custom_call.1} parent=5 // pred_region
        %s288 = ssub.s32 %s15, 1
        %p289 = scmp.lt.s32.totalorder %s25, 1
        %s290 = scalar_select %p289, %s25, 1
        %s291 = smul.addr %s290, 2
        %s292 = smul.addr %s291, 8
        %s293 = scalar_lea.vmem %s0, %s292
        %p294 = pneg %p60
        %p295 = pneg %p57
        %s296 = smul.u32 2, %s27
        %p297 = scmp.lt.s32.totalorder %s296, 1
        %s298 = scalar_select %p297, %s296, 1
        %s299 = smul.addr %s298, 8
        %s300 = scalar_lea.vmem %s1, %s299
        %p301 = pneg %p86
        %p302 = pneg %p83
        %p303 = scmp.lt.s32.totalorder %s26, 3
        %s304 = scalar_select %p303, %s26, 3
        %s305 = smul.addr %s304, 4
        %s306 = smul.addr %s305, 8
        %s307 = scalar_lea.vmem %s2, %s306
        %p308 = pneg %p112
        %p309 = pneg %p109
        %p310 = scmp.lt.s32.totalorder %s26, 3
        %s311 = scalar_select %p310, %s26, 3
        %s312 = scalar_lea.vmem %s3, %s311
        %p313 = pneg %p138
        %p314 = pneg %p135
        %p315 = scmp.lt.s32.totalorder %s26, 3
        %s316 = scalar_select %p315, %s26, 3
        %s317 = scalar_lea.vmem %s4, %s316
        %p318 = pneg %p164
        %p319 = pneg %p161
        %p320 = scmp.lt.s32.totalorder %s26, 3
        %s321 = scalar_select %p320, %s26, 3
        %s322 = scalar_lea.vmem %s5, %s321
        %p323 = pneg %p190
        %p324 = pneg %p187
        %p325 = pneg %p220
        %p326 = pneg %p217
        %s327 = sand.u32 %s207, 1
        %s328 = scalar_lea.sflag [#allocation5], %s327
        %s329 = sand.u32 %s207, 1
        %s330 = smul.addr %s329, 16
        %s331 = scalar_lea.vmem [#allocation4], %s330
        %p332 = scmp.lt.s32.totalorder %s25, 1
        %s333 = scalar_select %p332, %s25, 1
        %s334 = smul.addr %s333, 2
        %s335 = smul.addr %s334, 8
        %s336 = scalar_lea.vmem %s0, %s335
        %s337 = smul.u32 2, %s27
        %p338 = scmp.lt.s32.totalorder %s337, 1
        %s339 = scalar_select %p338, %s337, 1
        %s340 = smul.addr %s339, 8
        %s341 = scalar_lea.vmem %s1, %s340
        %s342 = smul.u32 2, %s27
        %p343 = scmp.lt.s32.totalorder %s26, 3
        %s344 = scalar_select %p343, %s26, 3
        %s345 = smul.addr %s344, 4
        %s346 = smul.addr %s345, 8
        %s347 = scalar_lea.vmem %s2, %s346
        %p348 = scmp.lt.s32.totalorder %s26, 3
        %s349 = scalar_select %p348, %s26, 3
        %s350 = scalar_lea.vmem %s3, %s349
        %p351 = scmp.lt.s32.totalorder %s26, 3
        %s352 = scalar_select %p351, %s26, 3
        %s353 = scalar_lea.vmem %s4, %s352
        %p354 = scmp.lt.s32.totalorder %s26, 3
        %s355 = scalar_select %p354, %s26, 3
        %s356 = scalar_lea.vmem %s5, %s355
        %s357 = smul.u32 2, %s27
        %p358 = scmp.eq.s32.totalorder %s27, 0
        // Predicated region
        $region45: #{tpu_custom_call.1} parent=43 // pred_check
          %p359 = pneg %p358
        $region46: #{tpu_custom_call.1} parent=43 // pred_check_branch
          %361 = sbr.rel (%p359) target = $region48
        $region47: #{tpu_custom_call.1} parent=43 // pred_region
          %v362 = vld [vmem:[%s336] sm:$0xff]
          %v363 = vld [vmem:[%s336 + $0x8] sm:$0xff]
          %v364 = vld [vmem:[%s347] sm:$0xff]
          %v365 = vld [vmem:[%s347 + $0x8] sm:$0xff]
          %v366 = vld [vmem:[%s347 + $0x10] sm:$0xff]
          %v367 = vld [vmem:[%s347 + $0x18] sm:$0xff]
          %vm368 = vcmask 64512
          %v370 = vsel %vm368, %v362, 0
          %v373 = vsel %vm368, %v363, 0
          %v376 = vsel %vm368, %v364, 0
          %v379 = vsel %vm368, %v365, 0
          %v382 = vsel %vm368, %v366, 0
          %v385 = vsel %vm368, %v367, 0
          %387 = vmatpush.xpose.msra.mxu0 0.0
          %388 = vmatpush.xpose.msra.mxu0 0.0
          %389 = vmatpush.xpose.msra.mxu0 0.0
          %390 = vmatpush.xpose.msra.mxu0 0.0
          %391 = vmatpush.xpose.msra.mxu0 0.0
          %392 = vmatpush.xpose.msra.mxu0 0.0
          %393 = vmatpush.xpose.msra.mxu0 0.0
          %394 = vmatpush.xpose.msra.mxu0 0.0
          %395 = vmatpush.xpose.msra.mxu0 0.0
          %396 = vmatpush.xpose.msra.mxu0 0.0
          %397 = vmatpush.xpose.msra.mxu0 0.0
          %398 = vmatpush.xpose.msra.mxu0 0.0
          %399 = vmatpush.xpose.msra.mxu0 %v385
          %400 = vmatpush.xpose.msra.mxu0 %v382
          %401 = vmatpush.xpose.msra.mxu0 %v379
          %402 = vmatpush.xpose.msra.mxu0 %v376
          %403 = vmatmul.f32.gmra.mxu0 %v370
          %v404 = vpop.f32.mrf.mxu0
          %v405 = vadd.f32 0.0, %v404
          %406 = vmatmul.f32.gmra.mxu0 %v373
          %v407 = vpop.f32.mrf.mxu0
          %v408 = vadd.f32 0.0, %v407
          %409 = vdwg.mxu0
          %vm410 = vcmask 261120
          %411 = vst.msk [vmem:[#allocation2] sm:$0xff] %vm410, %v405
          %412 = vst.msk [vmem:[#allocation2 + $0x8] sm:$0xff] %vm410, %v408
          %v413 = vld [vmem:[%s353] sm:$0x1]
          %v414 = vld [vmem:[#allocation2] sm:$0xff]
          %v415 = vld [vmem:[#allocation2 + $0x8] sm:$0xff]
          %v417 = vsel %vm410, %v413, 0
          %v420 = vsel %vm410, %v414, 0
          %v423 = vsel %vm410, %v415, 0
          %425 = vmatpush.xpose.msra.mxu0 0.0
          %426 = vmatpush.xpose.msra.mxu0 0.0
          %427 = vmatpush.xpose.msra.mxu0 0.0
          %428 = vmatpush.xpose.msra.mxu0 0.0
          %429 = vmatpush.xpose.msra.mxu0 0.0
          %430 = vmatpush.xpose.msra.mxu0 0.0
          %431 = vmatpush.xpose.msra.mxu0 0.0
          %432 = vmatpush.xpose.msra.mxu0 0.0
          %433 = vmatpush.xpose.msra.mxu0 0.0
          %434 = vmatpush.xpose.msra.mxu0 0.0
          %435 = vmatpush.xpose.msra.mxu0 0.0
          %436 = vmatpush.xpose.msra.mxu0 0.0
          %437 = vmatpush.xpose.msra.mxu0 0.0
          %438 = vmatpush.xpose.msra.mxu0 0.0
          %439 = vmatpush.xpose.msra.mxu0 %v423
          %440 = vmatpush.xpose.msra.mxu0 %v420
          %441 = vmatmul.f32.gmra.mxu0 %v417
          %v442 = vpop.f32.mrf.mxu0
          %v443 = vadd.f32 0.0, %v442
          %444 = vdwg.mxu0
          %vm445 = vcmask 122880
          %446 = vst.msk [vmem:[#allocation3] sm:$0x1] %vm445, %v443
        $region48: #{tpu_custom_call.1} parent=43 // pred_fallthru
          _
        %v447 = vld [vmem:[#allocation2] sm:$0xff]
        %v448 = vld [vmem:[#allocation2 + $0x8] sm:$0xff]
        %s449 = smul.u32 %s27, 16
        %s450 = scalar_lea.vmem [#allocation2], %s449
        %v451 = vld [vmem:[%s450] sm:$0xff]
        %v452 = vld [vmem:[%s450 + $0x8] sm:$0xff]
        %v453 = vld [vmem:[%s350] sm:$0x1]
        %v455 = vperm.slane %v453, 0
        %v457 = vmul.f32 %v451, %v455
        %v458 = vmul.f32 %v452, %v455
        %vm459 = vcmask 261120
        %v460 = vsel %vm459, %v457, 0.0
        %461 = vadd.xlane.f32.xlu0 %v460
        %v462 = vpop.xlane.xlu0 %461
        %v463 = vsel %vm459, %v458, 0.0
        %464 = vadd.xlane.f32.xlu0 %v463
        %v465 = vpop.xlane.xlu0 %464
        %v466 = vld [vmem:[#allocation3] sm:$0x1]
        %v468 = vperm.slane %v466, 0
        %v470 = vadd.f32 %v462, %v468
        %v471 = vadd.f32 %v465, %v468
        %vm472 = vcmp.ge.f32.partialorder %v470, 0.0
        %vm473 = vcmp.ge.f32.partialorder %v471, 0.0
        %v474 = vmul.f32 %v470, 0.2
        %v475 = vmul.f32 %v471, 0.2
        %v476 = vsel %vm472, %v470, %v474
        %v477 = vsel %vm473, %v471, %v475
        %v478 = vld [vmem:[%s341] sm:$0xff]
        %v479 = vld [vmem:[%s341 + $0x8] sm:$0xff]
        %v480 = vmul.f32 %v476, %v478
        %v481 = vmul.f32 %v477, %v479
        %vm482 = vcmp.eq.f32.partialorder %v480, 0.0
        %vm483 = vcmp.eq.f32.partialorder %v481, 0.0
        %v484 = vsel %vm482, -1e+16, %v480
        %v485 = vsel %vm483, -1e+16, %v481
        %vm486 = vcmask 130048
        %v487 = vsel %vm486, %v484, -inf
        %488 = vmax.xlane.f32.xlu0 %v487
        %v489 = vpop.xlane.xlu0 %488
        %v490 = vsel %vm486, %v485, -inf
        %491 = vmax.xlane.f32.xlu0 %v490
        %v492 = vpop.xlane.xlu0 %491
        %v493 = vsub.f32 %v484, %v489
        %v494 = vsub.f32 %v485, %v492
        %v495 = vmul.f32 %v493, 1.442695
        %v496 = vpow.pop %v495
        %v497 = vmul.f32 %v494, 1.442695
        %v498 = vpow.pop %v497
        %v499 = vsel %vm486, %v496, 0.0
        %500 = vadd.xlane.f32.xlu0 %v499
        %v501 = vpop.xlane.xlu0 %500
        %v502 = vsel %vm486, %v498, 0.0
        %503 = vadd.xlane.f32.xlu0 %v502
        %v504 = vpop.xlane.xlu0 %503
        %v506 = vsel %vm486, %v496, 0
        %v509 = vsel %vm486, %v498, 0
        %511 = vmatpush.msra.mxu0 0.0
        %512 = vmatpush.msra.mxu0 0.0
        %513 = vmatpush.msra.mxu0 0.0
        %514 = vmatpush.msra.mxu0 0.0
        %515 = vmatpush.msra.mxu0 0.0
        %516 = vmatpush.msra.mxu0 0.0
        %517 = vmatpush.msra.mxu0 0.0
        %518 = vmatpush.msra.mxu0 0.0
        %519 = vmatpush.msra.mxu0 0.0
        %520 = vmatpush.msra.mxu0 0.0
        %521 = vmatpush.msra.mxu0 0.0
        %522 = vmatpush.msra.mxu0 0.0
        %523 = vmatpush.msra.mxu0 0.0
        %524 = vmatpush.msra.mxu0 0.0
        %525 = vmatpush.msra.mxu0 %v448
        %526 = vmatpush.msra.mxu0 %v447
        %527 = vmatmul.f32.gmra.mxu0 %v506
        %v528 = vpop.f32.mrf.mxu0
        %v529 = vadd.f32 0.0, %v528
        %530 = vmatmul.f32.gmra.mxu0 %v509
        %v531 = vpop.f32.mrf.mxu0
        %v532 = vadd.f32 0.0, %v531
        %533 = vdwg.mxu0
        %v534 = vrcp.pop %v501
        %v535 = vmul.f32 %v501, %v534
        %v536 = vsub.f32 1.0, %v535
        %v537 = vmul.f32 %v534, %v536
        %v538 = vadd.f32 %v534, %v537
        %vm539 = vweird.f32 %v501
        %vm540 = vweird.f32 %v534
        %vm541 = vmor %vm539, %vm540
        %v542 = vsel %vm541, %v534, %v538
        %v543 = vand.u32 2147483647, %v501
        %vm544 = vcmp.eq.f32.partialorder %v543, 8.507059e+37
        %v545 = vand.u32 %v501, 2147483648
        %v546 = vor.u32 1.1754944e-38, %v545
        %v547 = vsel %vm544, %v546, %v542
        %v548 = vrcp.pop %v504
        %v549 = vmul.f32 %v504, %v548
        %v550 = vsub.f32 1.0, %v549
        %v551 = vmul.f32 %v548, %v550
        %v552 = vadd.f32 %v548, %v551
        %vm553 = vweird.f32 %v504
        %vm554 = vweird.f32 %v548
        %vm555 = vmor %vm553, %vm554
        %v556 = vsel %vm555, %v548, %v552
        %v557 = vand.u32 2147483647, %v504
        %vm558 = vcmp.eq.f32.partialorder %v557, 8.507059e+37
        %v559 = vand.u32 %v504, 2147483648
        %v560 = vor.u32 1.1754944e-38, %v559
        %v561 = vsel %vm558, %v560, %v556
        %v562 = vmul.f32 %v529, %v547
        %v563 = vmul.f32 %v532, %v561
        %v564 = vld [vmem:[%s356] sm:$0x1]
        %v566 = vperm.slane %v564, 0
        %v568 = vadd.f32 %v562, %v566
        %v569 = vadd.f32 %v563, %v566
        %vm570 = vcmp.ge.f32.partialorder %v568, 0.0
        %vm571 = vcmp.ge.f32.partialorder %v569, 0.0
        %v572 = vmul.f32 %v568, 0.01
        %v573 = vmul.f32 %v569, 0.01
        %v574 = vsel %vm570, %v568, %v572
        %v575 = vsel %vm571, %v569, %v573
        %576 = vst.msk [vmem:[%s331] sm:$0xff] %vm459, %v574
        %577 = vst.msk [vmem:[%s331 + $0x8] sm:$0xff] %vm459, %v575
        %s578 = sand.u32 %s207, 1
        %s579 = scalar_lea.sflag [#allocation5], %s578
        %s580 = sand.u32 %s207, 1
        %s581 = smul.addr %s580, 16
        %s582 = scalar_lea.vmem [#allocation4], %s581
        // Predicated region
        $region49: #{tpu_custom_call.1} parent=43 // pred_check
          %p583 = pneg %p217
        $region50: #{tpu_custom_call.1} parent=43 // pred_check_branch
          %585 = sbr.rel (%p583) target = $region52
        $region51: #{tpu_custom_call.1} parent=43 // pred_region
          %s586 = smul.u32 2, %s27
          %588 = vsyncadd %s579, 0
          %s589 = smul.addr %s26, 2
          %s590 = sadd.s32 %s586, %s589
          %s591 = smul.addr %s25, 8
          %s592 = sadd.s32 %s590, %s591
          %s593 = smul.addr %s592, 8
          %s594 = scalar_lea.hbm %s6, %s593
          %s595 = sshll.u32 %s582, 4
          %s596 = int_to_ptr.vmem [resolvable:$true] %s595
          %s597 = sshll.u32 %s594, 4
          %s598 = int_to_ptr.hbm [resolvable:$true] %s597
          %603 = dma.vmem_to_hbm [thread:$0]  %s596, 256, %s598, %s579, 128, 128, 8
        $region52: #{tpu_custom_call.1} parent=43 // pred_fallthru
          _
      $region44: #{tpu_custom_call.1} parent=5 // pred_fallthru
        _
      %p604 = scmp.le.s32.totalorder 2, %s15
      // Predicated region
      $region53: #{tpu_custom_call.1} parent=5 // pred_check
        %p605 = pneg %p604
      $region54: #{tpu_custom_call.1} parent=5 // pred_check_branch
        %607 = sbr.rel (%p605) target = $region56
      $region55: #{tpu_custom_call.1} parent=5 // pred_region
        %s608 = ssub.s32 %s15, 2
        // Predicated region
        $region57: #{tpu_custom_call.1} parent=55 // pred_check
          %p609 = pneg %p223
        $region58: #{tpu_custom_call.1} parent=55 // pred_check_branch
          %611 = sbr.rel (%p609) target = $region60
        $region59: #{tpu_custom_call.1} parent=55 // pred_region
          %s612 = sand.u32 %s208, 1
          %s613 = scalar_lea.sflag [#allocation5], %s612
          %s614 = sand.u32 %s208, 1
          %s615 = smul.addr %s614, 16
          %s616 = scalar_lea.vmem [#allocation4], %s615
          %618 = dma.done %s613, 256
        $region60: #{tpu_custom_call.1} parent=55 // pred_fallthru
          _
      $region56: #{tpu_custom_call.1} parent=5 // pred_fallthru
        _
    $region6: #{tpu_custom_call.1} parent=1 // loop_footer
      %s19 = sadd.s32 1, %s15
    $region7: #{tpu_custom_call.1} parent=1 // loop_footer_branch
      %14 = sbr.rel target = $region3
    $region8: #{tpu_custom_call.1} parent=1 // loop_exit
      _
    %619 = vsyncpa [#allocation5], 1
    %s620 = scalar_lea.sflag [#allocation5], 1
    %621 = vsyncpa %s620, 1

</llo_original>
